<compile_context>
chip_gen: v7x
topology: tpu7x:2x2x1
jax: 0.10.0
libtpu: 0.0.40
codegen_flags: <defaults>
</compile_context>

<pallas_src>
import jax
import jax.numpy as jnp
from jax import lax
from jax.experimental import pallas as pl
from jax.experimental.pallas import tpu as pltpu


def _casted_embedding_kernel(ids_ref, w_ref, out_ref):
    # ids_ref: VMEM (TB, 1) int32    -- token ids for this block (padded tail = -1)
    # w_ref:   VMEM (V, D) cast_to   -- full (small) embedding table, pre-cast, resident
    # out_ref: VMEM (TB, D) cast_to
    tb = out_ref.shape[0]
    V = w_ref.shape[0]

    ids = ids_ref[...]                                       # (TB, 1) int32
    iota = lax.broadcasted_iota(jnp.int32, (tb, V), 1)       # (TB, V)
    # One-hot selection matrix; ids outside [0, V) (incl. the -1 padding) give a
    # zero row -> zero output, never an out-of-bounds read.
    one_hot = (ids == iota).astype(w_ref.dtype)              # (TB, V) in cast_to

    # Single MXU pass per block; one-hot rows with f32 accumulation reproduce the
    # cast-then-gather result exactly. One full-tile, lane-dense store.
    out_ref[...] = jnp.dot(
        one_hot, w_ref[...], preferred_element_type=jnp.float32
    ).astype(out_ref.dtype)


def casted_embedding(ids, weight, cast_to=jnp.bfloat16, token_block=4096):
    """Equivalent of F.embedding(ids, weight.to(cast_to))."""
    orig_shape = ids.shape
    flat = ids.reshape(-1).astype(jnp.int32)
    n = flat.shape[0]
    V, D = weight.shape

    # "weight.to(cast_to)" done once in the wrapper (tiny V x D) -> kernel sees a
    # pre-cast table; no per-grid-step VPU cast, no f32 table double buffer.
    w_cast = weight.astype(cast_to)
    itemsize = jnp.dtype(cast_to).itemsize

    # Block size: multiple of 16 (native bf16 sublane packing), capped by the
    # (16-rounded) token count so tiny inputs don't over-pad.
    tb = min(token_block, ((n + 15) // 16) * 16)
    tb = max(16, (tb // 16) * 16)

    n_blocks = pl.cdiv(n, tb)
    nt = n_blocks * tb
    pad = nt - n
    if pad:
        # Pad only the cheap id stream (4 B/token); -1 is never a valid id so the
        # padded rows produce zero one-hot rows. The output keeps its true (n, D)
        # shape and the tail block's out-of-range rows are dropped by the masked
        # partial store -> no wrapper-side full-output slice copy.
        flat = jnp.concatenate([flat, jnp.full((pad,), -1, jnp.int32)])
    ids2d = flat.reshape(nt, 1)

    cost = pl.CostEstimate(
        flops=2 * nt * V * D,
        transcendentals=0,
        bytes_accessed=nt * D * itemsize + nt * 4 + V * D * itemsize,
    )

    out = pl.pallas_call(
        _casted_embedding_kernel,
        out_shape=jax.ShapeDtypeStruct((n, D), cast_to),
        grid_spec=pltpu.PrefetchScalarGridSpec(
            num_scalar_prefetch=0,
            grid=(n_blocks,),
            in_specs=[
                pl.BlockSpec((tb, 1), lambda i: (i, 0)),     # ids block
                pl.BlockSpec((V, D), lambda i: (0, 0)),      # full table, resident
            ],
            out_specs=pl.BlockSpec((tb, D), lambda i: (i, 0)),
        ),
        compiler_params=pltpu.CompilerParams(
            # Blocks are fully independent -> shard across TensorCores on v7x.
            dimension_semantics=("parallel",),
        ),
        cost_estimate=cost,
    )(ids2d, w_cast)

    return out.reshape(*orig_shape, D)


def trunc_normal_init(key, shape, std):
    # truncated normal in [-2*std, 2*std], matching trunc_normal_init_ semantics
    return jax.random.truncated_normal(key, -2.0, 2.0, shape, jnp.float32) * std


if __name__ == "__main__":
    NUM_EMBEDDINGS = 16
    EMBEDDING_DIM = 128
    INIT_STD = 0.02
    CAST_TO = jnp.bfloat16

    key = jax.random.PRNGKey(0)
    k_w, k_ids, k_ids2 = jax.random.split(key, 3)

    # deterministic parameter init (no checkpoint load)
    embedding_weight = trunc_normal_init(k_w, (NUM_EMBEDDINGS, EMBEDDING_DIM), INIT_STD)

    # small input consistent with the forward: integer ids of shape (batch, seq)
    batch, seq = 2, 8
    ids = jax.random.randint(k_ids, (batch, seq), 0, NUM_EMBEDDINGS, dtype=jnp.int32)

    out = casted_embedding(ids, embedding_weight, cast_to=CAST_TO)
    out = jax.block_until_ready(out)

    # reference: F.embedding(ids, weight.to(cast_to))
    ref = embedding_weight.astype(CAST_TO)[ids]

    assert out.shape == (batch, seq, EMBEDDING_DIM), out.shape
    assert out.dtype == CAST_TO, out.dtype
    assert jnp.array_equal(
        out.astype(jnp.float32), ref.astype(jnp.float32)
    ), "mismatch vs reference embedding lookup"

    # second case: exercises the non-divisible tail (masked partial-block store path)
    batch2, seq2 = 3, 111
    ids2 = jax.random.randint(k_ids2, (batch2, seq2), 0, NUM_EMBEDDINGS, dtype=jnp.int32)
    out2 = jax.block_until_ready(casted_embedding(ids2, embedding_weight, cast_to=CAST_TO))
    ref2 = embedding_weight.astype(CAST_TO)[ids2]
    assert out2.shape == (batch2, seq2, EMBEDDING_DIM), out2.shape
    assert jnp.array_equal(
        out2.astype(jnp.float32), ref2.astype(jnp.float32)
    ), "mismatch vs reference embedding lookup (partial tail block)"

    # third case: multi-block grid with a small token_block override
    ids3 = jax.random.randint(key, (4, 100), 0, NUM_EMBEDDINGS, dtype=jnp.int32)
    out3 = jax.block_until_ready(
        casted_embedding(ids3, embedding_weight, cast_to=CAST_TO, token_block=128)
    )
    ref3 = embedding_weight.astype(CAST_TO)[ids3]
    assert jnp.array_equal(
        out3.astype(jnp.float32), ref3.astype(jnp.float32)
    ), "mismatch vs reference embedding lookup (multi-block)"

    print("KERNEL_OK")
</pallas_src>

<mosaic_0001>
module attributes {stable_mosaic.version = 11 : i64} {
  func.func @_casted_embedding_kernel(%arg0: i32, %arg1: memref<16x1xi32, #tpu.memory_space<vmem>>, %arg2: memref<16x128xbf16, #tpu.memory_space<vmem>>, %arg3: memref<16x128xbf16, #tpu.memory_space<vmem>>) attributes {dimension_semantics = [#tpu.dimension_semantics<parallel>], iteration_bounds = array<i64: 1>, scalar_prefetch = 0 : i64, scratch_operands = 0 : i64, tpu.core_type = #tpu.core_type<tc>, window_params = [{transform_indices = @transform_0, window_bounds = array<i64: 16, 1>}, {pipeline_mode = #tpu.pipeline_mode<synchronous>, transform_indices = @transform_1, window_bounds = array<i64: 16, 128>}, {transform_indices = @transform_2, window_bounds = array<i64: 16, 128>}]} {
    %c0 = arith.constant 0 : index
    %c0_0 = arith.constant 0 : index
    %0 = vector.load %arg1[%c0, %c0_0] : memref<16x1xi32, #tpu.memory_space<vmem>>, vector<16x1xi32>
    %1 = tpu.iota {dimensions = array<i32: 1>} : vector<16x16xi32>
    %2 = vector.broadcast %0 : vector<16x1xi32> to vector<16x16xi32>
    %3 = arith.cmpi eq, %2, %1 : vector<16x16xi32>
    %4 = arith.extui %3 : vector<16x16xi1> to vector<16x16xi32>
    %5 = arith.sitofp %4 : vector<16x16xi32> to vector<16x16xf32>
    %6 = arith.truncf %5 : vector<16x16xf32> to vector<16x16xbf16>
    %c0_1 = arith.constant 0 : index
    %c0_2 = arith.constant 0 : index
    %7 = vector.load %arg2[%c0_1, %c0_2] : memref<16x128xbf16, #tpu.memory_space<vmem>>, vector<16x128xbf16>
    %cst = arith.constant dense<0.000000e+00> : vector<16x128xf32>
    %8 = tpu.matmul %6, %7, %cst {dimension_numbers = #tpu.dot_dimension_numbers<[1], [0], [0], [1], [0, 0, 1, 1], [], []>} : vector<16x16xbf16>, vector<16x128xbf16>, vector<16x128xf32> -> vector<16x128xf32>
    %9 = arith.truncf %8 : vector<16x128xf32> to vector<16x128xbf16>
    %c0_3 = arith.constant 0 : index
    %c0_4 = arith.constant 0 : index
    %10 = vector.load %arg3[%c0_3, %c0_4] : memref<16x128xbf16, #tpu.memory_space<vmem>>, vector<16x128xbf16>
    tpu.vector_store %arg3[%c0_3, %c0_4], %9 {strides = array<i32>} : memref<16x128xbf16, #tpu.memory_space<vmem>>, vector<16x128xbf16>,
    return
  }
  func.func @transform_0(%arg0: i32) -> (i32, i32) {
    %c0_i32 = arith.constant 0 : i32
    %c0_i32_0 = arith.constant 0 : i32
    return %arg0, %c0_i32 : i32, i32
  }
  func.func @transform_1(%arg0: i32) -> (i32, i32) {
    %c0_i32 = arith.constant 0 : i32
    %c0_i32_0 = arith.constant 0 : i32
    %c0_i32_1 = arith.constant 0 : i32
    return %c0_i32, %c0_i32_0 : i32, i32
  }
  func.func @transform_2(%arg0: i32) -> (i32, i32) {
    %c0_i32 = arith.constant 0 : i32
    %c0_i32_0 = arith.constant 0 : i32
    return %arg0, %c0_i32 : i32, i32
  }
}

</mosaic_0001>

<llo_original>
// kernel: tpu_custom_call.1
$region0: #{tpu_custom_call.1}
  #allocation0 [shape = 'u32[]', space=smem, size = 0x4, offset = 0x4, fixed_abs, tag = 'smem constant byte address 0x4 - core index']
  #allocation1 [shape = 'u32[144,128]{1,0:T(1,128)}', space=vmem, size = 0x12000, scoped, tag = 'internal scratch']
  %s0 = inlined_call_operand.vmem [shape: s32[16,1], index: 0, kind: input, shape index: {}]
  %s1 = inlined_call_operand.vmem [shape: bf16[16,128], index: 1, kind: input, shape index: {}]
  %s2 = inlined_call_operand.hbm [shape: bf16[16,128], index: 2, kind: output, shape index: {}]
  %s3 = sld [smem:[#allocation0]]
  $region18: #{tpu_custom_call.1} parent=0
    _
  %s5 = ssub.s32 1, %s3
  %s6 = scalar_select 0, %s5, %s3
  $region1: #{tpu_custom_call.1} parent=0
    #allocation2 [shape = 'u8[4096]{0}', space=vmem, size = 0x1000, scoped, tag = 'output window, operand 0, single buffered']
    #allocation3 [shape = 's32[1]{0}', space=sflag, size = 0x4, scoped, tag = 'scoped memory for tpu_custom_call.1']
    %7 = vsyncpa [#allocation3], 0
    // Predicated region
    $region2: #{tpu_custom_call.1} parent=1 // pred_check
      _
    $region3: #{tpu_custom_call.1} parent=1 // pred_check_branch
      %9 = sbr.rel (0) target = $region5
    $region4: #{tpu_custom_call.1} parent=1 // pred_region
      _
    $region5: #{tpu_custom_call.1} parent=1 // pred_fallthru
      _
    // Predicated region
    $region6: #{tpu_custom_call.1} parent=1 // pred_check
      _
    $region7: #{tpu_custom_call.1} parent=1 // pred_check_branch
      %11 = sbr.rel (0) target = $region9
    $region8: #{tpu_custom_call.1} parent=1 // pred_region
      _
    $region9: #{tpu_custom_call.1} parent=1 // pred_fallthru
      _
    %v13 = vld [vmem:[%s0] sm:$0xff]
    %v14 = vld [vmem:[%s0 + $0x8] sm:$0xff]
    %v15 = vlaneseq
    %v16 = vand.u32 %v15, 127
    %17 = vset.pattern.permute.xlu0 0
    %18 = vperm.xlu0 %17, %v13
    %v19 = vpop.permute.xlu0 %18
    %20 = vset.pattern.permute.xlu0 0
    %21 = vperm.xlu0 %20, %v14
    %v22 = vpop.permute.xlu0 %21
    %vm23 = vcmp.eq.s32.totalorder %v19, %v16
    %vm24 = vcmp.eq.s32.totalorder %v22, %v16
    %v25 = vsel %vm23, 1, 0
    %v26 = vsel %vm24, 1, 0
    %v27 = vcvt.s32.f32 %v25
    %v28 = vcvt.s32.f32 %v26
    %v29 = vpack.c.bf16 %v28, %v27
    %v30 = vld [vmem:[%s1] sm:$0xf]
    %v31 = vld [vmem:[%s1 + $0x4] sm:$0xf]
    %v34 = vunpack.c.l.b16 %v30
    %v35 = vunpack.c.l.b16 %v31
    %v36 = vpack.c.b16 %v35, %v34
    %vm38 = vcmask 130048
    %v40 = vsel %vm38, %v29, 0
    %42 = vmatprep.subr.bf16.mxu0 0
    %43 = vmatpush1.bf16.msra.mxu0 %v36
    %44 = vmatprep.subr.bf16.mxu0 0
    %45 = vmatpush1.bf16.msra.mxu0 0
    %46 = vmatprep.subr.bf16.mxu0 0
    %47 = vmatpush1.bf16.msra.mxu0 0
    %48 = vmatprep.subr.bf16.mxu0 0
    %49 = vmatpush1.bf16.msra.mxu0 0
    %50 = vmatprep.subr.bf16.mxu0 0
    %51 = vmatpush1.bf16.msra.mxu0 0
    %52 = vmatprep.subr.bf16.mxu0 0
    %53 = vmatpush1.bf16.msra.mxu0 0
    %54 = vmatprep.subr.bf16.mxu0 0
    %55 = vmatpush1.bf16.msra.mxu0 0
    %56 = vmatprep.subr.bf16.mxu0 0
    %57 = vmatpush1.bf16.msra.mxu0 0
    %58 = vmatprep.subr.bf16.mxu0 0
    %59 = vmatpush1.bf16.msra.mxu0 0
    %60 = vmatprep.subr.bf16.mxu0 0
    %61 = vmatpush1.bf16.msra.mxu0 0
    %62 = vmatprep.subr.bf16.mxu0 0
    %63 = vmatpush1.bf16.msra.mxu0 0
    %64 = vmatprep.subr.bf16.mxu0 0
    %65 = vmatpush1.bf16.msra.mxu0 0
    %66 = vmatprep.subr.bf16.mxu0 0
    %67 = vmatpush1.bf16.msra.mxu0 0
    %68 = vmatprep.subr.bf16.mxu0 0
    %69 = vmatpush1.bf16.msra.mxu0 0
    %70 = vmatprep.subr.bf16.mxu0 0
    %71 = vmatpush1.bf16.msra.mxu0 0
    %72 = vmatprep.subr.bf16.mxu0 0
    %73 = vmatpush1.bf16.msra.mxu0 0
    %74 = vmatprep.mubr.bf16.mxu0 0
    %75 = vmatmul.mubr.bf16.gmra.mrb[0].mxu0 %v40
    %v76 = vpop.f32.mrb[0].mxu0
    %v77 = vadd.f32 0.0, %v76
    %v78 = vpop.f32.mrb[0].mxu0
    %v79 = vpop.f32.mrb[0].mxu0
    %v80 = vadd.f32 0.0, %v79
    %v81 = vpop.f32.mrb[0].mxu0
    %82 = vdwg.mxu0
    %v83 = vpack.c.bf16 %v80, %v77
    %v85 = vunpack.c.l.b16 %v83
    %v86 = vunpack.c.h.b16 %v83
    %v87 = vpack.c.b16 %v85, %v85
    %v88 = vpack.c.b16 %v86, %v86
    %91 = vst [vmem:[#allocation2] sm:$0xf] %v87
    %92 = vst [vmem:[#allocation2 + $0x4] sm:$0xf] %v88
    // Predicated region
    $region10: #{tpu_custom_call.1} parent=1 // pred_check
      _
    $region11: #{tpu_custom_call.1} parent=1 // pred_check_branch
      %94 = sbr.rel (0) target = $region13
    $region12: #{tpu_custom_call.1} parent=1 // pred_region
      %s96 = ssub.s32 128, 128
      %97 = vsyncadd [#allocation3], %s96
      %s98 = sshll.u32 [#allocation2], 4
      %s99 = int_to_ptr.vmem [resolvable:$true] %s98
      %104 = dma.vmem_to_hbm [thread:$0]  %s99, 128, %s2, [#allocation3], 64, 64, 4
    $region13: #{tpu_custom_call.1} parent=1 // pred_fallthru
      _
    // Predicated region
    $region14: #{tpu_custom_call.1} parent=1 // pred_check
      _
    $region15: #{tpu_custom_call.1} parent=1 // pred_check_branch
      %106 = sbr.rel (0) target = $region17
    $region16: #{tpu_custom_call.1} parent=1 // pred_region
      %107 = dma.done [#allocation3], 128
    $region17: #{tpu_custom_call.1} parent=1 // pred_fallthru
      _
    %108 = vsyncpa [#allocation3], 1

</llo_original>
